<compile_context>
chip_gen: v7x
topology: tpu7x:2x2x1
jax: 0.10.0
libtpu: 0.0.40
codegen_flags: <defaults>
</compile_context>

<pallas_src>
import jax
import jax.numpy as jnp
from jax.experimental import pallas as pl
from jax.experimental.pallas import tpu as pltpu


def attention_kernel(hidden_ref, enc_ref, w_h_ref, w_e_ref, b_ref, vec_ref,
                     out_ref):
    # hidden_ref: [TB, Dh] f32        enc_ref: [TB*S, E2] bf16
    # w_h_ref:    [Dh, Dh] f32        w_e_ref: [E2, Dh]  bf16
    # b_ref/vec_ref: [1, Dh] f32      out_ref: [TB, S]   f32
    TB, Dh = hidden_ref.shape
    R, _ = enc_ref.shape
    S = R // TB

    # Hidden projection: S-invariant, computed once per batch row (the
    # reference's repeat() becomes a broadcast below). f32 in, f32 acc.
    proj_h = (jnp.dot(hidden_ref[...], w_h_ref[...],
                      preferred_element_type=jnp.float32)
              + b_ref[...])                                          # [TB, Dh]

    # Encoder projection: ONE MXU matmul over all TB*S rows of this block,
    # bf16 operands (halved HBM/VMEM traffic), f32 accumulation.
    proj_e = jnp.dot(enc_ref[...], w_e_ref[...],
                     preferred_element_type=jnp.float32)             # [TB*S, Dh]

    # Small f32 intermediate reshape (layout-free when S % 8 == 0); the large
    # bf16 input reshape was hoisted to the wrapper.
    assoc = jnp.tanh(proj_e.reshape(TB, S, Dh) + proj_h[:, None, :])  # [TB,S,Dh]

    # score[b, s] = <assoc[b, s, :], vec>  -- reduction over the lane axis.
    scores = jnp.sum(assoc * vec_ref[...], axis=-1)                  # [TB, S]

    # Row softmax over S (lane axis), max-subtracted; divide on the EUP slot.
    m = jnp.max(scores, axis=-1, keepdims=True)
    e = jnp.exp(scores - m)
    denom = jnp.sum(e, axis=-1, keepdims=True)
    out_ref[...] = e * pl.reciprocal(denom, approx=True)


def _pick_batch_tile(B, S, E2):
    """Batch-tile so each encoder block has ~1024 rows, capped for v7x VMEM."""
    rows_target = 1024                     # ~85% of HBM roofline on v5e
    bytes_cap = 4 * 1024 * 1024            # bf16 encoder tile cap (double-buffered)
    tb = max(1, rows_target // max(S, 1))
    tb = min(tb, max(1, bytes_cap // max(S * E2 * 2, 1)))
    tb = min(tb, B)
    if tb < B:                             # keep partial tiles sublane-aligned
        tb = max(8, (tb // 8) * 8)
        tb = min(tb, B)
    return max(1, tb)


def _vmem_limit_bytes(TB, S, E2, Dh):
    """Scoped-VMEM limit derived from real tile bytes (portable v5e/v6e/v7x)."""
    enc_tile = TB * S * E2 * 2             # bf16 encoder block
    hid_tile = TB * Dh * 4
    out_tile = TB * S * 4
    weights = Dh * Dh * 4 + E2 * Dh * 2 + 2 * Dh * 4
    temps = 4 * TB * S * Dh * 4            # f32 proj_e / assoc / scores / exp
    need = 2 * (2 * (enc_tile + hid_tile + out_tile) + weights + temps)
    return int(min(max(need, 4 * 1024 * 1024), 48 * 1024 * 1024))


def attention_forward(hidden, encoder_outputs, attn_w, attn_b, vec, *,
                      batch_tile=None):
    """Pallas port of Attention.forward.

    attn_w: [dec_H, dec_H + 2*enc_H] (PyTorch nn.Linear layout; the reference
            concatenates [hidden ; encoder_outputs]), attn_b: [dec_H],
            vec: [dec_H].
    """
    B, S, E2 = encoder_outputs.shape
    Dh = hidden.shape[-1]

    # Host-side split + transpose of the Linear weight removes the in-kernel
    # lane-axis concatenate.  W_e and the encoder operand go to bf16 for the
    # big memory-bound matmul; everything else stays f32.
    w_h = jnp.transpose(attn_w[:, :Dh]).astype(jnp.float32)     # [Dh, Dh]
    w_e = jnp.transpose(attn_w[:, Dh:]).astype(jnp.bfloat16)    # [E2, Dh]
    b2d = attn_b.reshape(1, Dh).astype(jnp.float32)
    vec2d = vec.reshape(1, Dh).astype(jnp.float32)
    hidden = hidden.astype(jnp.float32)
    # Hoisted reshape: present the encoder tensor as a lane-dense 2-D slab.
    enc2d = encoder_outputs.reshape(B * S, E2).astype(jnp.bfloat16)

    TB = batch_tile if batch_tile is not None else _pick_batch_tile(B, S, E2)
    TB = max(1, min(TB, B))
    if TB < B:
        TB = max(8, (TB // 8) * 8)
        TB = min(TB, B)
    grid = (pl.cdiv(B, TB),)

    const2d = lambda i: (0, 0)
    in_specs = [
        pl.BlockSpec((TB, Dh), lambda i: (i, 0)),        # hidden (tiled)
        pl.BlockSpec((TB * S, E2), lambda i: (i, 0)),    # encoder rows (tiled, bf16)
        pl.BlockSpec((Dh, Dh), const2d),                 # W_h   (resident)
        pl.BlockSpec((E2, Dh), const2d),                 # W_e   (resident, bf16)
        pl.BlockSpec((1, Dh), const2d),                  # bias  (resident)
        pl.BlockSpec((1, Dh), const2d),                  # vec   (resident)
    ]
    out_specs = pl.BlockSpec((TB, S), lambda i: (i, 0))

    return pl.pallas_call(
        attention_kernel,
        out_shape=jax.ShapeDtypeStruct((B, S), jnp.float32),
        grid=grid,
        in_specs=in_specs,
        out_specs=out_specs,
        compiler_params=pltpu.CompilerParams(
            dimension_semantics=("parallel",),
            vmem_limit_bytes=_vmem_limit_bytes(TB, S, E2, Dh)),
    )(hidden, enc2d, w_h, w_e, b2d, vec2d)


def attention_ref(hidden, encoder_outputs, attn_w, attn_b, vec):
    """Pure-JAX reference matching the PyTorch module exactly (all f32)."""
    B, S, _ = encoder_outputs.shape
    h_rep = jnp.broadcast_to(hidden[:, None, :], (B, S, hidden.shape[-1]))
    cat = jnp.concatenate([h_rep, encoder_outputs], axis=-1)
    assoc = jnp.tanh(cat @ attn_w.T + attn_b)                       # [B,S,Dh]
    scores = jnp.einsum('bsd,d->bs', assoc, vec)                    # [B,S]
    return jax.nn.softmax(scores, axis=-1)


if __name__ == "__main__":
    B, S = 16, 8
    ENC_H, DEC_H = 32, 32
    E2 = 2 * ENC_H

    key = jax.random.PRNGKey(0)
    k_h, k_e, k_w, k_b, k_v = jax.random.split(key, 5)

    hidden = jax.random.normal(k_h, (B, DEC_H), jnp.float32)
    encoder_outputs = jax.random.normal(k_e, (B, S, E2), jnp.float32)
    attn_w = 0.1 * jax.random.normal(k_w, (DEC_H, DEC_H + E2), jnp.float32)
    attn_b = 0.1 * jax.random.normal(k_b, (DEC_H,), jnp.float32)
    vec = jax.random.uniform(k_v, (DEC_H,), jnp.float32)

    # batch_tile=8 -> grid of 2 steps, exercising the pipelined / parallel path.
    out = attention_forward(hidden, encoder_outputs, attn_w, attn_b, vec,
                            batch_tile=8)
    out = jax.block_until_ready(out)
    assert out.shape == (B, S)

    ref = attention_ref(hidden, encoder_outputs, attn_w, attn_b, vec)
    err = jnp.max(jnp.abs(out - ref))
    # Tolerance reflects the bf16 encoder/W_e operands (f32 accumulation) and
    # the approximate (EUP) reciprocal in the softmax normalization.
    assert jnp.allclose(out, ref, atol=1e-2, rtol=2e-2), f"max abs err {err}"

    print("KERNEL_OK")
</pallas_src>

<mosaic_0001>
module attributes {stable_mosaic.version = 11 : i64} {
  func.func @attention_kernel(%arg0: i32, %arg1: memref<8x32xf32, #tpu.memory_space<vmem>>, %arg2: memref<64x64xbf16, #tpu.memory_space<vmem>>, %arg3: memref<32x32xf32, #tpu.memory_space<vmem>>, %arg4: memref<64x32xbf16, #tpu.memory_space<vmem>>, %arg5: memref<1x32xf32, #tpu.memory_space<vmem>>, %arg6: memref<1x32xf32, #tpu.memory_space<vmem>>, %arg7: memref<8x8xf32, #tpu.memory_space<vmem>>) attributes {dimension_semantics = [#tpu.dimension_semantics<parallel>], iteration_bounds = array<i64: 2>, scalar_prefetch = 0 : i64, scratch_operands = 0 : i64, tpu.core_type = #tpu.core_type<tc>, window_params = [{transform_indices = @transform_0, window_bounds = array<i64: 8, 32>}, {transform_indices = @transform_1, window_bounds = array<i64: 64, 64>}, {pipeline_mode = #tpu.pipeline_mode<synchronous>, transform_indices = @transform_2, window_bounds = array<i64: 32, 32>}, {pipeline_mode = #tpu.pipeline_mode<synchronous>, transform_indices = @transform_3, window_bounds = array<i64: 64, 32>}, {pipeline_mode = #tpu.pipeline_mode<synchronous>, transform_indices = @transform_4, window_bounds = array<i64: 1, 32>}, {pipeline_mode = #tpu.pipeline_mode<synchronous>, transform_indices = @transform_5, window_bounds = array<i64: 1, 32>}, {transform_indices = @transform_6, window_bounds = array<i64: 8, 8>}]} {
    %c0 = arith.constant 0 : index
    %c0_0 = arith.constant 0 : index
    %0 = vector.load %arg1[%c0, %c0_0] : memref<8x32xf32, #tpu.memory_space<vmem>>, vector<8x32xf32>
    %c0_1 = arith.constant 0 : index
    %c0_2 = arith.constant 0 : index
    %1 = vector.load %arg3[%c0_1, %c0_2] : memref<32x32xf32, #tpu.memory_space<vmem>>, vector<32x32xf32>
    %cst = arith.constant dense<0.000000e+00> : vector<8x32xf32>
    %2 = tpu.matmul %0, %1, %cst {dimension_numbers = #tpu.dot_dimension_numbers<[1], [0], [0], [1], [0, 0, 1, 1], [], []>} : vector<8x32xf32>, vector<32x32xf32>, vector<8x32xf32> -> vector<8x32xf32>
    %c0_3 = arith.constant 0 : index
    %c0_4 = arith.constant 0 : index
    %3 = vector.load %arg5[%c0_3, %c0_4] : memref<1x32xf32, #tpu.memory_space<vmem>>, vector<1x32xf32>
    %4 = vector.broadcast %3 : vector<1x32xf32> to vector<8x32xf32>
    %5 = arith.addf %2, %4 : vector<8x32xf32>
    %c0_5 = arith.constant 0 : index
    %c0_6 = arith.constant 0 : index
    %6 = vector.load %arg2[%c0_5, %c0_6] : memref<64x64xbf16, #tpu.memory_space<vmem>>, vector<64x64xbf16>
    %c0_7 = arith.constant 0 : index
    %c0_8 = arith.constant 0 : index
    %7 = vector.load %arg4[%c0_7, %c0_8] : memref<64x32xbf16, #tpu.memory_space<vmem>>, vector<64x32xbf16>
    %cst_9 = arith.constant dense<0.000000e+00> : vector<64x32xf32>
    %8 = tpu.matmul %6, %7, %cst_9 {dimension_numbers = #tpu.dot_dimension_numbers<[1], [0], [0], [1], [0, 0, 1, 1], [], []>} : vector<64x64xbf16>, vector<64x32xbf16>, vector<64x32xf32> -> vector<64x32xf32>
    %9 = vector.shape_cast %8 : vector<64x32xf32> to vector<8x8x32xf32>
    %10 = vector.shape_cast %5 : vector<8x32xf32> to vector<8x1x32xf32>
    %11 = vector.broadcast %10 : vector<8x1x32xf32> to vector<8x8x32xf32>
    %12 = arith.addf %9, %11 : vector<8x8x32xf32>
    %13 = math.tanh %12 : vector<8x8x32xf32>
    %c0_10 = arith.constant 0 : index
    %c0_11 = arith.constant 0 : index
    %14 = vector.load %arg6[%c0_10, %c0_11] : memref<1x32xf32, #tpu.memory_space<vmem>>, vector<1x32xf32>
    %15 = vector.shape_cast %14 : vector<1x32xf32> to vector<1x1x32xf32>
    %16 = vector.broadcast %15 : vector<1x1x32xf32> to vector<8x8x32xf32>
    %17 = arith.mulf %13, %16 : vector<8x8x32xf32>
    %cst_12 = arith.constant dense<0.000000e+00> : vector<8x8xf32>
    %18 = vector.multi_reduction <add>, %17, %cst_12 [2] : vector<8x8x32xf32> to vector<8x8xf32>
    %cst_13 = arith.constant dense<0xFF800000> : vector<8xf32>
    %19 = vector.multi_reduction <maximumf>, %18, %cst_13 [1] : vector<8x8xf32> to vector<8xf32>
    %20 = vector.shape_cast %19 : vector<8xf32> to vector<8x1xf32>
    %21 = vector.broadcast %20 : vector<8x1xf32> to vector<8x8xf32>
    %22 = arith.subf %18, %21 : vector<8x8xf32>
    %23 = math.exp %22 : vector<8x8xf32>
    %cst_14 = arith.constant dense<0.000000e+00> : vector<8xf32>
    %24 = vector.multi_reduction <add>, %23, %cst_14 [1] : vector<8x8xf32> to vector<8xf32>
    %25 = vector.shape_cast %24 : vector<8xf32> to vector<8x1xf32>
    %26 = tpu.reciprocal %25 {approx = true} : vector<8x1xf32> -> vector<8x1xf32>
    %27 = vector.broadcast %26 : vector<8x1xf32> to vector<8x8xf32>
    %28 = arith.mulf %23, %27 : vector<8x8xf32>
    %c0_15 = arith.constant 0 : index
    %c0_16 = arith.constant 0 : index
    %29 = vector.load %arg7[%c0_15, %c0_16] : memref<8x8xf32, #tpu.memory_space<vmem>>, vector<8x8xf32>
    tpu.vector_store %arg7[%c0_15, %c0_16], %28 {strides = array<i32>} : memref<8x8xf32, #tpu.memory_space<vmem>>, vector<8x8xf32>,
    return
  }
  func.func @transform_0(%arg0: i32) -> (i32, i32) {
    %c0_i32 = arith.constant 0 : i32
    %c0_i32_0 = arith.constant 0 : i32
    return %arg0, %c0_i32 : i32, i32
  }
  func.func @transform_1(%arg0: i32) -> (i32, i32) {
    %c0_i32 = arith.constant 0 : i32
    %c0_i32_0 = arith.constant 0 : i32
    return %arg0, %c0_i32 : i32, i32
  }
  func.func @transform_2(%arg0: i32) -> (i32, i32) {
    %c0_i32 = arith.constant 0 : i32
    %c0_i32_0 = arith.constant 0 : i32
    %c0_i32_1 = arith.constant 0 : i32
    return %c0_i32, %c0_i32_0 : i32, i32
  }
  func.func @transform_3(%arg0: i32) -> (i32, i32) {
    %c0_i32 = arith.constant 0 : i32
    %c0_i32_0 = arith.constant 0 : i32
    %c0_i32_1 = arith.constant 0 : i32
    return %c0_i32, %c0_i32_0 : i32, i32
  }
  func.func @transform_4(%arg0: i32) -> (i32, i32) {
    %c0_i32 = arith.constant 0 : i32
    %c0_i32_0 = arith.constant 0 : i32
    %c0_i32_1 = arith.constant 0 : i32
    return %c0_i32, %c0_i32_0 : i32, i32
  }
  func.func @transform_5(%arg0: i32) -> (i32, i32) {
    %c0_i32 = arith.constant 0 : i32
    %c0_i32_0 = arith.constant 0 : i32
    %c0_i32_1 = arith.constant 0 : i32
    return %c0_i32, %c0_i32_0 : i32, i32
  }
  func.func @transform_6(%arg0: i32) -> (i32, i32) {
    %c0_i32 = arith.constant 0 : i32
    %c0_i32_0 = arith.constant 0 : i32
    return %arg0, %c0_i32 : i32, i32
  }
}

</mosaic_0001>

<llo_original>
// kernel: tpu_custom_call.1
$region0: #{tpu_custom_call.1}
  #allocation0 [shape = 'u32[]', space=smem, size = 0x4, offset = 0x4, fixed_abs, tag = 'smem constant byte address 0x4 - core index']
  #allocation1 [shape = 'u32[144,128]{1,0:T(1,128)}', space=vmem, size = 0x12000, scoped, tag = 'internal scratch']
  %s0 = inlined_call_operand.vmem [shape: f32[16,32], index: 0, kind: input, shape index: {}]
  %s1 = inlined_call_operand.vmem [shape: bf16[128,64], index: 1, kind: input, shape index: {}]
  %s2 = inlined_call_operand.vmem [shape: f32[32,32], index: 2, kind: input, shape index: {}]
  %s3 = inlined_call_operand.vmem [shape: bf16[64,32], index: 3, kind: input, shape index: {}]
  %s4 = inlined_call_operand.vmem [shape: f32[1,32], index: 4, kind: input, shape index: {}]
  %s5 = inlined_call_operand.vmem [shape: f32[1,32], index: 5, kind: input, shape index: {}]
  %s6 = inlined_call_operand.vmem [shape: f32[16,8], index: 6, kind: output, shape index: {}]
  %s7 = sld [smem:[#allocation0]]
  $region57: #{tpu_custom_call.1} parent=0
    _
  %s9 = ssub.s32 1, %s7
  %s10 = scalar_select 0, %s9, %s7
  loop: start=0, step=1, limit=4
  $region2: #{tpu_custom_call.1} parent=0 // loop_pre_header
    _
  $region3: #{tpu_custom_call.1} parent=0 // loop_header
    %s12 = sphi 0, %s16
    %p13 = scmp.ge.s32.totalorder %s12, 4
    %s22 = sphi 0, %s24
    %s25 = sphi 0, %s22
    %s26 = sphi 0, %s25
    %s42 = sphi 0, %s26
    %s48 = sphi 0, %s50
    %s51 = sphi 0, %s48
    %s52 = sphi 0, %s51
    %s68 = sphi 0, %s52
    %s72 = sphi 0, %s72
    %s74 = sphi 0, %s72
    %s75 = sphi 0, %s74
    %s89 = sphi 0, %s75
    %s93 = sphi 0, %s93
    %s95 = sphi 0, %s93
    %s96 = sphi 0, %s95
    %s110 = sphi 0, %s96
    %s114 = sphi 0, %s114
    %s116 = sphi 0, %s114
    %s117 = sphi 0, %s116
    %s131 = sphi 0, %s117
    %s135 = sphi 0, %s135
    %s137 = sphi 0, %s135
    %s138 = sphi 0, %s137
    %s152 = sphi 0, %s138
    %s158 = sphi 0, %s160
    %s161 = sphi 0, %s158
    %s162 = sphi 0, %s161
    %s178 = sphi 0, %s162
  $region4: #{tpu_custom_call.1} parent=0 // loop_header_branch
    %15 = sbr.rel (%p13) target = $region8
  $region5: #{tpu_custom_call.1} parent=0 // loop_body
    %s17 = ssub.s32 %s12, 1
    %s18 = ssub.s32 %s12, 2
    %s19 = sadd.s32 %s12, 1
    %s20 = ssub.s32 %s12, %s19
    %p21 = scmp.eq.s32.totalorder %s20, 0
    %s23 = sadd.s32 %s22, 1
    %s24 = scalar_select %p21, %s22, %s23
    %p27 = pneg %p21
    %p28 = scmp.eq.s32.totalorder %s12, 1
    %p29 = por %p27, %p28
    %p30 = scmp.ne.s32.totalorder %s22, %s25
    %p31 = scmp.eq.s32.totalorder %s12, 0
    %p32 = por %p30, %p31
    %p33 = scmp.ne.s32.totalorder %s22, %s25
    %p34 = scmp.eq.s32.totalorder %s17, 1
    %p35 = por %p33, %p34
    %p36 = scmp.ne.s32.totalorder %s25, %s26
    %p37 = scmp.eq.s32.totalorder %s17, 0
    %p38 = por %p36, %p37
    %p39 = scmp.ne.s32.totalorder %s25, %s26
    %p40 = scmp.eq.s32.totalorder %s18, 1
    %p41 = por %p39, %p40
    %p43 = scmp.ne.s32.totalorder %s26, %s42
    %p44 = scmp.eq.s32.totalorder %s18, 0
    %p45 = por %p43, %p44
    %s46 = ssub.s32 %s12, %s19
    %p47 = scmp.eq.s32.totalorder %s46, 0
    %s49 = sadd.s32 %s48, 1
    %s50 = scalar_select %p47, %s48, %s49
    %p53 = pneg %p47
    %p54 = scmp.eq.s32.totalorder %s12, 1
    %p55 = por %p53, %p54
    %p56 = scmp.ne.s32.totalorder %s48, %s51
    %p57 = scmp.eq.s32.totalorder %s12, 0
    %p58 = por %p56, %p57
    %p59 = scmp.ne.s32.totalorder %s48, %s51
    %p60 = scmp.eq.s32.totalorder %s17, 1
    %p61 = por %p59, %p60
    %p62 = scmp.ne.s32.totalorder %s51, %s52
    %p63 = scmp.eq.s32.totalorder %s17, 0
    %p64 = por %p62, %p63
    %p65 = scmp.ne.s32.totalorder %s51, %s52
    %p66 = scmp.eq.s32.totalorder %s18, 1
    %p67 = por %p65, %p66
    %p69 = scmp.ne.s32.totalorder %s52, %s68
    %p70 = scmp.eq.s32.totalorder %s18, 0
    %p71 = por %p69, %p70
    %s73 = sadd.s32 %s72, 1
    %p76 = scmp.eq.s32.totalorder %s12, 1
    %p77 = scmp.ne.s32.totalorder %s72, %s74
    %p78 = scmp.eq.s32.totalorder %s12, 0
    %p79 = por %p77, %p78
    %p80 = scmp.ne.s32.totalorder %s72, %s74
    %p81 = scmp.eq.s32.totalorder %s17, 1
    %p82 = por %p80, %p81
    %p83 = scmp.ne.s32.totalorder %s74, %s75
    %p84 = scmp.eq.s32.totalorder %s17, 0
    %p85 = por %p83, %p84
    %p86 = scmp.ne.s32.totalorder %s74, %s75
    %p87 = scmp.eq.s32.totalorder %s18, 1
    %p88 = por %p86, %p87
    %p90 = scmp.ne.s32.totalorder %s75, %s89
    %p91 = scmp.eq.s32.totalorder %s18, 0
    %p92 = por %p90, %p91
    %s94 = sadd.s32 %s93, 1
    %p97 = scmp.eq.s32.totalorder %s12, 1
    %p98 = scmp.ne.s32.totalorder %s93, %s95
    %p99 = scmp.eq.s32.totalorder %s12, 0
    %p100 = por %p98, %p99
    %p101 = scmp.ne.s32.totalorder %s93, %s95
    %p102 = scmp.eq.s32.totalorder %s17, 1
    %p103 = por %p101, %p102
    %p104 = scmp.ne.s32.totalorder %s95, %s96
    %p105 = scmp.eq.s32.totalorder %s17, 0
    %p106 = por %p104, %p105
    %p107 = scmp.ne.s32.totalorder %s95, %s96
    %p108 = scmp.eq.s32.totalorder %s18, 1
    %p109 = por %p107, %p108
    %p111 = scmp.ne.s32.totalorder %s96, %s110
    %p112 = scmp.eq.s32.totalorder %s18, 0
    %p113 = por %p111, %p112
    %s115 = sadd.s32 %s114, 1
    %p118 = scmp.eq.s32.totalorder %s12, 1
    %p119 = scmp.ne.s32.totalorder %s114, %s116
    %p120 = scmp.eq.s32.totalorder %s12, 0
    %p121 = por %p119, %p120
    %p122 = scmp.ne.s32.totalorder %s114, %s116
    %p123 = scmp.eq.s32.totalorder %s17, 1
    %p124 = por %p122, %p123
    %p125 = scmp.ne.s32.totalorder %s116, %s117
    %p126 = scmp.eq.s32.totalorder %s17, 0
    %p127 = por %p125, %p126
    %p128 = scmp.ne.s32.totalorder %s116, %s117
    %p129 = scmp.eq.s32.totalorder %s18, 1
    %p130 = por %p128, %p129
    %p132 = scmp.ne.s32.totalorder %s117, %s131
    %p133 = scmp.eq.s32.totalorder %s18, 0
    %p134 = por %p132, %p133
    %s136 = sadd.s32 %s135, 1
    %p139 = scmp.eq.s32.totalorder %s12, 1
    %p140 = scmp.ne.s32.totalorder %s135, %s137
    %p141 = scmp.eq.s32.totalorder %s12, 0
    %p142 = por %p140, %p141
    %p143 = scmp.ne.s32.totalorder %s135, %s137
    %p144 = scmp.eq.s32.totalorder %s17, 1
    %p145 = por %p143, %p144
    %p146 = scmp.ne.s32.totalorder %s137, %s138
    %p147 = scmp.eq.s32.totalorder %s17, 0
    %p148 = por %p146, %p147
    %p149 = scmp.ne.s32.totalorder %s137, %s138
    %p150 = scmp.eq.s32.totalorder %s18, 1
    %p151 = por %p149, %p150
    %p153 = scmp.ne.s32.totalorder %s138, %s152
    %p154 = scmp.eq.s32.totalorder %s18, 0
    %p155 = por %p153, %p154
    %s156 = ssub.s32 %s12, %s19
    %p157 = scmp.eq.s32.totalorder %s156, 0
    %s159 = sadd.s32 %s158, 1
    %s160 = scalar_select %p157, %s158, %s159
    %p163 = pneg %p157
    %p164 = scmp.eq.s32.totalorder %s12, 1
    %p165 = por %p163, %p164
    %p166 = scmp.ne.s32.totalorder %s158, %s161
    %p167 = scmp.eq.s32.totalorder %s12, 0
    %p168 = por %p166, %p167
    %p169 = scmp.ne.s32.totalorder %s158, %s161
    %p170 = scmp.eq.s32.totalorder %s17, 1
    %p171 = por %p169, %p170
    %p172 = scmp.ne.s32.totalorder %s161, %s162
    %p173 = scmp.eq.s32.totalorder %s17, 0
    %p174 = por %p172, %p173
    %p175 = scmp.ne.s32.totalorder %s161, %s162
    %p176 = scmp.eq.s32.totalorder %s18, 1
    %p177 = por %p175, %p176
    %p179 = scmp.ne.s32.totalorder %s162, %s178
    %p180 = scmp.eq.s32.totalorder %s18, 0
    %p181 = por %p179, %p180
    %p182 = scmp.le.s32.totalorder 1, %s12
    %p183 = scmp.lt.s32.totalorder %s12, 3
    %p184 = pnand %p182, %p183
    %p185 = pneg %p184
    // Predicated region
    $region9: #{tpu_custom_call.1} parent=5 // pred_check
      _
    $region10: #{tpu_custom_call.1} parent=5 // pred_check_branch
      %187 = sbr.rel (%p184) target = $region12
    $region11: #{tpu_custom_call.1} parent=5 // pred_region
      %s188 = ssub.s32 %s12, 1
      // Predicated region
      $region13: #{tpu_custom_call.1} parent=11 // pred_check
        %p189 = pneg %p85
      $region14: #{tpu_custom_call.1} parent=11 // pred_check_branch
        %191 = sbr.rel (%p189) target = $region16
      $region15: #{tpu_custom_call.1} parent=11 // pred_region
        _
      $region16: #{tpu_custom_call.1} parent=11 // pred_fallthru
        _
      // Predicated region
      $region17: #{tpu_custom_call.1} parent=11 // pred_check
        %p192 = pneg %p106
      $region18: #{tpu_custom_call.1} parent=11 // pred_check_branch
        %194 = sbr.rel (%p192) target = $region20
      $region19: #{tpu_custom_call.1} parent=11 // pred_region
        _
      $region20: #{tpu_custom_call.1} parent=11 // pred_fallthru
        _
      // Predicated region
      $region21: #{tpu_custom_call.1} parent=11 // pred_check
        %p195 = pneg %p127
      $region22: #{tpu_custom_call.1} parent=11 // pred_check_branch
        %197 = sbr.rel (%p195) target = $region24
      $region23: #{tpu_custom_call.1} parent=11 // pred_region
        _
      $region24: #{tpu_custom_call.1} parent=11 // pred_fallthru
        _
      // Predicated region
      $region25: #{tpu_custom_call.1} parent=11 // pred_check
        %p198 = pneg %p148
      $region26: #{tpu_custom_call.1} parent=11 // pred_check_branch
        %200 = sbr.rel (%p198) target = $region28
      $region27: #{tpu_custom_call.1} parent=11 // pred_region
        _
      $region28: #{tpu_custom_call.1} parent=11 // pred_fallthru
        _
    $region12: #{tpu_custom_call.1} parent=5 // pred_fallthru
      _
    %p201 = scmp.lt.s32.totalorder %s12, 2
    // Predicated region
    $region29: #{tpu_custom_call.1} parent=5 // pred_check
      %p202 = pneg %p201
    $region30: #{tpu_custom_call.1} parent=5 // pred_check_branch
      %204 = sbr.rel (%p202) target = $region32
    $region31: #{tpu_custom_call.1} parent=5 // pred_region
      // Predicated region
      $region33: #{tpu_custom_call.1} parent=31 // pred_check
        %p205 = pneg %p32
      $region34: #{tpu_custom_call.1} parent=31 // pred_check_branch
        %207 = sbr.rel (%p205) target = $region36
      $region35: #{tpu_custom_call.1} parent=31 // pred_region
        %p208 = scmp.lt.s32.totalorder %s12, 1
        %s209 = scalar_select %p208, %s12, 1
        %s210 = smul.addr %s209, 8
        %s211 = scalar_lea.vmem %s0, %s210
      $region36: #{tpu_custom_call.1} parent=31 // pred_fallthru
        _
      // Predicated region
      $region37: #{tpu_custom_call.1} parent=31 // pred_check
        %p212 = pneg %p58
      $region38: #{tpu_custom_call.1} parent=31 // pred_check_branch
        %214 = sbr.rel (%p212) target = $region40
      $region39: #{tpu_custom_call.1} parent=31 // pred_region
        %s215 = smul.u32 8, %s12
        %p216 = scmp.lt.s32.totalorder %s215, 15
        %s217 = scalar_select %p216, %s215, 15
        %s218 = smul.addr %s217, 4
        %s219 = scalar_lea.vmem %s1, %s218
        %s220 = smul.u32 8, %s12
      $region40: #{tpu_custom_call.1} parent=31 // pred_fallthru
        _
    $region32: #{tpu_custom_call.1} parent=5 // pred_fallthru
      _
    %p221 = scmp.le.s32.totalorder 1, %s12
    %p222 = scmp.lt.s32.totalorder %s12, 3
    %p223 = pnand %p221, %p222
    %p224 = pneg %p223
    // Predicated region
    $region41: #{tpu_custom_call.1} parent=5 // pred_check
      _
    $region42: #{tpu_custom_call.1} parent=5 // pred_check_branch
      %226 = sbr.rel (%p223) target = $region44
    $region43: #{tpu_custom_call.1} parent=5 // pred_region
      %s227 = ssub.s32 %s12, 1
      %p228 = scmp.lt.s32.totalorder %s17, 1
      %s229 = scalar_select %p228, %s17, 1
      %s230 = smul.addr %s229, 8
      %s231 = scalar_lea.vmem %s0, %s230
      %p232 = pneg %p38
      %p233 = pneg %p35
      %s234 = smul.u32 8, %s17
      %p235 = scmp.lt.s32.totalorder %s234, 15
      %s236 = scalar_select %p235, %s234, 15
      %s237 = smul.addr %s236, 4
      %s238 = scalar_lea.vmem %s1, %s237
      %p239 = pneg %p64
      %p240 = pneg %p61
      %p241 = pneg %p85
      %p242 = pneg %p82
      %p243 = pneg %p106
      %p244 = pneg %p103
      %p245 = pneg %p127
      %p246 = pneg %p124
      %p247 = pneg %p148
      %p248 = pneg %p145
      %p249 = pneg %p174
      %p250 = pneg %p171
      %p251 = scmp.lt.s32.totalorder %s17, 1
      %s252 = scalar_select %p251, %s17, 1
      %s253 = smul.addr %s252, 8
      %s254 = scalar_lea.vmem %s6, %s253
      %p255 = scmp.lt.s32.totalorder %s17, 1
      %s256 = scalar_select %p255, %s17, 1
      %s257 = smul.addr %s256, 8
      %s258 = scalar_lea.vmem %s0, %s257
      %s259 = smul.u32 8, %s17
      %p260 = scmp.lt.s32.totalorder %s259, 15
      %s261 = scalar_select %p260, %s259, 15
      %s262 = smul.addr %s261, 4
      %s263 = scalar_lea.vmem %s1, %s262
      %s264 = smul.u32 8, %s17
      %p265 = scmp.lt.s32.totalorder %s17, 1
      %s266 = scalar_select %p265, %s17, 1
      %s267 = smul.addr %s266, 8
      %s268 = scalar_lea.vmem %s6, %s267
      %v270 = vld [vmem:[%s258] sm:$0xff]
      %v271 = vld [vmem:[%s2] sm:$0xff]
      %v272 = vld [vmem:[%s2 + $0x8] sm:$0xff]
      %v273 = vld [vmem:[%s2 + $0x10] sm:$0xff]
      %v274 = vld [vmem:[%s2 + $0x18] sm:$0xff]
      %v275 = vld [vmem:[%s4] sm:$0x1]
      %v277 = vlaneseq
      %v278 = vshrl.u32 %v277, 7
      %v279 = vsub.s32 0, %v278
      %v280 = vrot.slane %v275, %v279
      %vm282 = vcmask 261120
      %v284 = vsel %vm282, %v270, 0
      %286 = vmatprep.subr.mxu0 0.0
      %287 = vmatpush1.msra.mxu0 %v271
      %288 = vmatprep.subr.mxu0 0.0
      %289 = vmatpush1.msra.mxu0 %v272
      %290 = vmatprep.subr.mxu0 0.0
      %291 = vmatpush1.msra.mxu0 %v273
      %292 = vmatprep.subr.mxu0 0.0
      %293 = vmatpush1.msra.mxu0 %v274
      %294 = vmatprep.subr.mxu0 0.0
      %295 = vmatpush1.msra.mxu0 0.0
      %296 = vmatprep.subr.mxu0 0.0
      %297 = vmatpush1.msra.mxu0 0.0
      %298 = vmatprep.subr.mxu0 0.0
      %299 = vmatpush1.msra.mxu0 0.0
      %300 = vmatprep.subr.mxu0 0.0
      %301 = vmatpush1.msra.mxu0 0.0
      %302 = vmatprep.subr.mxu0 0.0
      %303 = vmatpush1.msra.mxu0 0.0
      %304 = vmatprep.subr.mxu0 0.0
      %305 = vmatpush1.msra.mxu0 0.0
      %306 = vmatprep.subr.mxu0 0.0
      %307 = vmatpush1.msra.mxu0 0.0
      %308 = vmatprep.subr.mxu0 0.0
      %309 = vmatpush1.msra.mxu0 0.0
      %310 = vmatprep.subr.mxu0 0.0
      %311 = vmatpush1.msra.mxu0 0.0
      %312 = vmatprep.subr.mxu0 0.0
      %313 = vmatpush1.msra.mxu0 0.0
      %314 = vmatprep.subr.mxu0 0.0
      %315 = vmatpush1.msra.mxu0 0.0
      %316 = vmatprep.subr.mxu0 0.0
      %317 = vmatpush1.msra.mxu0 0.0
      %318 = vmatprep.subr.mxu0 0.0
      %319 = vmatpush1.msra.mxu0 0.0
      %320 = vmatprep.subr.mxu0 0.0
      %321 = vmatpush1.msra.mxu0 0.0
      %322 = vmatprep.subr.mxu0 0.0
      %323 = vmatpush1.msra.mxu0 0.0
      %324 = vmatprep.subr.mxu0 0.0
      %325 = vmatpush1.msra.mxu0 0.0
      %326 = vmatprep.subr.mxu0 0.0
      %327 = vmatpush1.msra.mxu0 0.0
      %328 = vmatprep.subr.mxu0 0.0
      %329 = vmatpush1.msra.mxu0 0.0
      %330 = vmatprep.subr.mxu0 0.0
      %331 = vmatpush1.msra.mxu0 0.0
      %332 = vmatprep.subr.mxu0 0.0
      %333 = vmatpush1.msra.mxu0 0.0
      %334 = vmatprep.subr.mxu0 0.0
      %335 = vmatpush1.msra.mxu0 0.0
      %336 = vmatprep.subr.mxu0 0.0
      %337 = vmatpush1.msra.mxu0 0.0
      %338 = vmatprep.subr.mxu0 0.0
      %339 = vmatpush1.msra.mxu0 0.0
      %340 = vmatprep.subr.mxu0 0.0
      %341 = vmatpush1.msra.mxu0 0.0
      %342 = vmatprep.subr.mxu0 0.0
      %343 = vmatpush1.msra.mxu0 0.0
      %344 = vmatprep.subr.mxu0 0.0
      %345 = vmatpush1.msra.mxu0 0.0
      %346 = vmatprep.subr.mxu0 0.0
      %347 = vmatpush1.msra.mxu0 0.0
      %348 = vmatprep.subr.mxu0 0.0
      %349 = vmatpush1.msra.mxu0 0.0
      %350 = vmatprep.mubr.f32.mxu0 0.0
      %351 = vmatmul.mubr.f32.gmra.mrb[0].mxu0 %v284
      %v352 = vpop.f32.mrb[0].mxu0
      %v353 = vadd.f32 %v280, %v352
      %v354 = vpop.f32.mrb[0].mxu0
      %355 = vdwg.mxu0
      %v356 = vld [vmem:[%s263] sm:$0xf]
      %v357 = vld [vmem:[%s263 + $0x4] sm:$0xf]
      %v358 = vld [vmem:[%s263 + $0x8] sm:$0xf]
      %v359 = vld [vmem:[%s263 + $0xc] sm:$0xf]
      %v360 = vld [vmem:[%s263 + $0x10] sm:$0xf]
      %v361 = vld [vmem:[%s263 + $0x14] sm:$0xf]
      %v362 = vld [vmem:[%s263 + $0x18] sm:$0xf]
      %v363 = vld [vmem:[%s263 + $0x1c] sm:$0xf]
      %v364 = vld [vmem:[%s3] sm:$0xf]
      %v365 = vld [vmem:[%s3 + $0x4] sm:$0xf]
      %v366 = vld [vmem:[%s3 + $0x8] sm:$0xf]
      %v367 = vld [vmem:[%s3 + $0xc] sm:$0xf]
      %v368 = vld [vmem:[%s3 + $0x10] sm:$0xf]
      %v369 = vld [vmem:[%s3 + $0x14] sm:$0xf]
      %v370 = vld [vmem:[%s3 + $0x18] sm:$0xf]
      %v371 = vld [vmem:[%s3 + $0x1c] sm:$0xf]
      %v380 = vunpack.c.l.b16 %v356
      %v381 = vunpack.c.l.b16 %v357
      %v382 = vunpack.c.l.b16 %v358
      %v383 = vunpack.c.l.b16 %v359
      %v384 = vunpack.c.l.b16 %v360
      %v385 = vunpack.c.l.b16 %v361
      %v386 = vunpack.c.l.b16 %v362
      %v387 = vunpack.c.l.b16 %v363
      %v388 = vpack.c.b16 %v381, %v380
      %v389 = vpack.c.b16 %v383, %v382
      %v390 = vpack.c.b16 %v385, %v384
      %v391 = vpack.c.b16 %v387, %v386
      %v400 = vunpack.c.l.b16 %v364
      %v401 = vunpack.c.l.b16 %v365
      %v402 = vunpack.c.l.b16 %v366
      %v403 = vunpack.c.l.b16 %v367
      %v404 = vunpack.c.l.b16 %v368
      %v405 = vunpack.c.l.b16 %v369
      %v406 = vunpack.c.l.b16 %v370
      %v407 = vunpack.c.l.b16 %v371
      %v408 = vpack.c.b16 %v401, %v400
      %v409 = vpack.c.b16 %v403, %v402
      %v410 = vpack.c.b16 %v405, %v404
      %v411 = vpack.c.b16 %v407, %v406
      %vm416 = vcmask 523264
      %v418 = vsel %vm416, %v388, 0
      %v421 = vsel %vm416, %v389, 0
      %v424 = vsel %vm416, %v390, 0
      %v427 = vsel %vm416, %v391, 0
      %429 = vmatprep.subr.bf16.mxu0 0
      %430 = vmatpush1.bf16.msra.mxu0 %v408
      %431 = vmatprep.subr.bf16.mxu0 0
      %432 = vmatpush1.bf16.msra.mxu0 %v409
      %433 = vmatprep.subr.bf16.mxu0 0
      %434 = vmatpush1.bf16.msra.mxu0 %v410
      %435 = vmatprep.subr.bf16.mxu0 0
      %436 = vmatpush1.bf16.msra.mxu0 %v411
      %437 = vmatprep.subr.bf16.mxu0 0
      %438 = vmatpush1.bf16.msra.mxu0 0
      %439 = vmatprep.subr.bf16.mxu0 0
      %440 = vmatpush1.bf16.msra.mxu0 0
      %441 = vmatprep.subr.bf16.mxu0 0
      %442 = vmatpush1.bf16.msra.mxu0 0
      %443 = vmatprep.subr.bf16.mxu0 0
      %444 = vmatpush1.bf16.msra.mxu0 0
      %445 = vmatprep.subr.bf16.mxu0 0
      %446 = vmatpush1.bf16.msra.mxu0 0
      %447 = vmatprep.subr.bf16.mxu0 0
      %448 = vmatpush1.bf16.msra.mxu0 0
      %449 = vmatprep.subr.bf16.mxu0 0
      %450 = vmatpush1.bf16.msra.mxu0 0
      %451 = vmatprep.subr.bf16.mxu0 0
      %452 = vmatpush1.bf16.msra.mxu0 0
      %453 = vmatprep.subr.bf16.mxu0 0
      %454 = vmatpush1.bf16.msra.mxu0 0
      %455 = vmatprep.subr.bf16.mxu0 0
      %456 = vmatpush1.bf16.msra.mxu0 0
      %457 = vmatprep.subr.bf16.mxu0 0
      %458 = vmatpush1.bf16.msra.mxu0 0
      %459 = vmatprep.subr.bf16.mxu0 0
      %460 = vmatpush1.bf16.msra.mxu0 0
      %461 = vmatprep.mubr.bf16.mxu0 0
      %462 = vmatmul.mubr.bf16.gmra.mrb[0].mxu0 %v418
      %v463 = vpop.f32.mrb[0].mxu0
      %v464 = vadd.f32 0.0, %v463
      %v465 = vpop.f32.mrb[0].mxu0
      %v466 = vpop.f32.mrb[0].mxu0
      %v467 = vadd.f32 0.0, %v466
      %v468 = vpop.f32.mrb[0].mxu0
      %469 = vmatprep.mubr.bf16.mxu0 0
      %470 = vmatmul.mubr.bf16.gmra.mrb[0].mxu0 %v421
      %v471 = vpop.f32.mrb[0].mxu0
      %v472 = vadd.f32 0.0, %v471
      %v473 = vpop.f32.mrb[0].mxu0
      %v474 = vpop.f32.mrb[0].mxu0
      %v475 = vadd.f32 0.0, %v474
      %v476 = vpop.f32.mrb[0].mxu0
      %477 = vmatprep.mubr.bf16.mxu0 0
      %478 = vmatmul.mubr.bf16.gmra.mrb[0].mxu0 %v424
      %v479 = vpop.f32.mrb[0].mxu0
      %v480 = vadd.f32 0.0, %v479
      %v481 = vpop.f32.mrb[0].mxu0
      %v482 = vpop.f32.mrb[0].mxu0
      %v483 = vadd.f32 0.0, %v482
      %v484 = vpop.f32.mrb[0].mxu0
      %485 = vmatprep.mubr.bf16.mxu0 0
      %486 = vmatmul.mubr.bf16.gmra.mrb[0].mxu0 %v427
      %v487 = vpop.f32.mrb[0].mxu0
      %v488 = vadd.f32 0.0, %v487
      %v489 = vpop.f32.mrb[0].mxu0
      %v490 = vpop.f32.mrb[0].mxu0
      %v491 = vadd.f32 0.0, %v490
      %v492 = vpop.f32.mrb[0].mxu0
      %493 = vdwg.mxu0
      %v495 = vcombine.high %v353, %v353
      %v497 = vunpack.c.l.s4 1966171168
      %v498 = vunpack.c.0.s8 %v497
      %v499 = vlaneseq
      %v500 = vshrl.u32 %v499, 7
      %v501 = vsub.s32 %v498, %v500
      %v502 = vrot.slane %v353, %v501
      %v504 = vunpack.c.l.s4 1966171168
      %v505 = vunpack.c.0.s8 %v504
      %v506 = vlaneseq
      %v507 = vshrl.u32 %v506, 7
      %v508 = vsub.s32 %v505, %v507
      %v509 = vrot.slane %v495, %v508
      %v510 = vcombine.high %v502, %v502
      %v511 = vcombine.high %v509, %v509
      %v513 = vunpack.c.l.s4 1966171168
      %v514 = vunpack.c.0.s8 %v513
      %v515 = vlaneseq
      %v516 = vshrl.u32 %v515, 7
      %v517 = vsub.s32 %v514, %v516
      %v518 = vrot.slane %v502, %v517
      %v520 = vunpack.c.l.s4 1966171168
      %v521 = vunpack.c.0.s8 %v520
      %v522 = vlaneseq
      %v523 = vshrl.u32 %v522, 7
      %v524 = vsub.s32 %v521, %v523
      %v525 = vrot.slane %v509, %v524
      %v527 = vunpack.c.l.s4 1966171168
      %v528 = vunpack.c.0.s8 %v527
      %v529 = vlaneseq
      %v530 = vshrl.u32 %v529, 7
      %v531 = vsub.s32 %v528, %v530
      %v532 = vrot.slane %v510, %v531
      %v534 = vunpack.c.l.s4 1966171168
      %v535 = vunpack.c.0.s8 %v534
      %v536 = vlaneseq
      %v537 = vshrl.u32 %v536, 7
      %v538 = vsub.s32 %v535, %v537
      %v539 = vrot.slane %v511, %v538
      %v540 = vcombine.high %v518, %v518
      %v541 = vcombine.high %v525, %v525
      %v542 = vcombine.high %v532, %v532
      %v543 = vcombine.high %v539, %v539
      %v544 = vlaneseq
      %v545 = vshrl.u32 %v544, 7
      %v546 = vsub.s32 0, %v545
      %v547 = vrot.slane %v518, %v546
      %v548 = vlaneseq
      %v549 = vshrl.u32 %v548, 7
      %v550 = vsub.s32 0, %v549
      %v551 = vrot.slane %v532, %v550
      %v552 = vlaneseq
      %v553 = vshrl.u32 %v552, 7
      %v554 = vsub.s32 0, %v553
      %v555 = vrot.slane %v540, %v554
      %v556 = vlaneseq
      %v557 = vshrl.u32 %v556, 7
      %v558 = vsub.s32 0, %v557
      %v559 = vrot.slane %v542, %v558
      %v560 = vlaneseq
      %v561 = vshrl.u32 %v560, 7
      %v562 = vsub.s32 0, %v561
      %v563 = vrot.slane %v525, %v562
      %v564 = vlaneseq
      %v565 = vshrl.u32 %v564, 7
      %v566 = vsub.s32 0, %v565
      %v567 = vrot.slane %v539, %v566
      %v568 = vlaneseq
      %v569 = vshrl.u32 %v568, 7
      %v570 = vsub.s32 0, %v569
      %v571 = vrot.slane %v541, %v570
      %v572 = vlaneseq
      %v573 = vshrl.u32 %v572, 7
      %v574 = vsub.s32 0, %v573
      %v575 = vrot.slane %v543, %v574
      %v584 = vadd.f32 %v464, %v547
      %v585 = vadd.f32 %v467, %v551
      %v586 = vadd.f32 %v472, %v555
      %v587 = vadd.f32 %v475, %v559
      %v588 = vadd.f32 %v480, %v563
      %v589 = vadd.f32 %v483, %v567
      %v590 = vadd.f32 %v488, %v571
      %v591 = vadd.f32 %v491, %v575
      %v592 = vtanh.pop %v584
      %v593 = vtanh.pop %v585
      %v594 = vtanh.pop %v586
      %v595 = vtanh.pop %v587
      %v596 = vtanh.pop %v588
      %v597 = vtanh.pop %v589
      %v598 = vtanh.pop %v590
      %v599 = vtanh.pop %v591
      %v600 = vld [vmem:[%s5] sm:$0x1]
      %v602 = vlaneseq
      %v603 = vshrl.u32 %v602, 7
      %v604 = vsub.s32 0, %v603
      %v605 = vrot.slane %v600, %v604
      %v607 = vmul.f32 %v592, %v605
      %v608 = vmul.f32 %v593, %v605
      %v609 = vmul.f32 %v594, %v605
      %v610 = vmul.f32 %v595, %v605
      %v611 = vmul.f32 %v596, %v605
      %v612 = vmul.f32 %v597, %v605
      %v613 = vmul.f32 %v598, %v605
      %v614 = vmul.f32 %v599, %v605
      %v615 = vsel %vm282, %v607, 0.0
      %616 = vadd.xlane.f32.xlu0 %v615
      %v617 = vpop.xlane.xlu0 %616
      %v618 = vsel %vm282, %v608, 0.0
      %619 = vadd.xlane.f32.xlu0 %v618
      %v620 = vpop.xlane.xlu0 %619
      %v621 = vsel %vm282, %v609, 0.0
      %622 = vadd.xlane.f32.xlu0 %v621
      %v623 = vpop.xlane.xlu0 %622
      %v624 = vsel %vm282, %v610, 0.0
      %625 = vadd.xlane.f32.xlu0 %v624
      %v626 = vpop.xlane.xlu0 %625
      %v627 = vsel %vm282, %v611, 0.0
      %628 = vadd.xlane.f32.xlu0 %v627
      %v629 = vpop.xlane.xlu0 %628
      %v630 = vsel %vm282, %v612, 0.0
      %631 = vadd.xlane.f32.xlu0 %v630
      %v632 = vpop.xlane.xlu0 %631
      %v633 = vsel %vm282, %v613, 0.0
      %634 = vadd.xlane.f32.xlu0 %v633
      %v635 = vpop.xlane.xlu0 %634
      %v636 = vsel %vm282, %v614, 0.0
      %637 = vadd.xlane.f32.xlu0 %v636
      %v638 = vpop.xlane.xlu0 %637
      %v647 = vlaneseq
      %v648 = vand.u32 %v647, 127
      %v649 = vlaneseq
      %v650 = vshrl.u32 %v649, 7
      %v651 = vsub.s32 %v648, %v650
      %v652 = vrot.slane %v617, %v651
      %v653 = vlaneseq
      %v654 = vshrl.u32 %v653, 7
      %v655 = vsub.s32 %v648, %v654
      %v656 = vrot.slane %v620, %v655
      %v657 = vlaneseq
      %v658 = vshrl.u32 %v657, 7
      %v659 = vsub.s32 %v648, %v658
      %v660 = vrot.slane %v623, %v659
      %v661 = vlaneseq
      %v662 = vshrl.u32 %v661, 7
      %v663 = vsub.s32 %v648, %v662
      %v664 = vrot.slane %v626, %v663
      %v665 = vlaneseq
      %v666 = vshrl.u32 %v665, 7
      %v667 = vsub.s32 %v648, %v666
      %v668 = vrot.slane %v629, %v667
      %v669 = vlaneseq
      %v670 = vshrl.u32 %v669, 7
      %v671 = vsub.s32 %v648, %v670
      %v672 = vrot.slane %v632, %v671
      %v673 = vlaneseq
      %v674 = vshrl.u32 %v673, 7
      %v675 = vsub.s32 %v648, %v674
      %v676 = vrot.slane %v635, %v675
      %v677 = vlaneseq
      %v678 = vshrl.u32 %v677, 7
      %v679 = vsub.s32 %v648, %v678
      %v680 = vrot.slane %v638, %v679
      %vm681 = vcmask 1041409
      %v682 = vsel %vm681, %v656, %v652
      %vm683 = vcmask 1042434
      %v684 = vsel %vm683, %v660, %v682
      %vm685 = vcmask 1043459
      %v686 = vsel %vm685, %v664, %v684
      %vm687 = vcmask 1044484
      %v688 = vsel %vm687, %v668, %v686
      %vm689 = vcmask 1045509
      %v690 = vsel %vm689, %v672, %v688
      %vm691 = vcmask 1046534
      %v692 = vsel %vm691, %v676, %v690
      %vm693 = vcmask 1047559
      %v694 = vsel %vm693, %v680, %v692
      %vm696 = vcmask 64512
      %v697 = vsel %vm696, %v694, -inf
      %698 = vmax.xlane.f32.xlu0 %v697
      %v699 = vpop.xlane.xlu0 %698
      %v701 = vlaneseq
      %v702 = vshrl.u32 %v701, 7
      %v703 = vsub.s32 0, %v702
      %v704 = vrot.slane %v699, %v703
      %v705 = vlaneseq
      %v706 = vshrl.u32 %v705, 7
      %v707 = vsub.s32 1, %v706
      %v708 = vrot.slane %v699, %v707
      %v709 = vlaneseq
      %v710 = vshrl.u32 %v709, 7
      %v711 = vsub.s32 2, %v710
      %v712 = vrot.slane %v699, %v711
      %v713 = vlaneseq
      %v714 = vshrl.u32 %v713, 7
      %v715 = vsub.s32 3, %v714
      %v716 = vrot.slane %v699, %v715
      %v717 = vlaneseq
      %v718 = vshrl.u32 %v717, 7
      %v719 = vsub.s32 4, %v718
      %v720 = vrot.slane %v699, %v719
      %v721 = vlaneseq
      %v722 = vshrl.u32 %v721, 7
      %v723 = vsub.s32 5, %v722
      %v724 = vrot.slane %v699, %v723
      %v725 = vlaneseq
      %v726 = vshrl.u32 %v725, 7
      %v727 = vsub.s32 6, %v726
      %v728 = vrot.slane %v699, %v727
      %v729 = vlaneseq
      %v730 = vshrl.u32 %v729, 7
      %v731 = vsub.s32 7, %v730
      %v732 = vrot.slane %v699, %v731
      %v741 = vsub.f32 %v617, %v704
      %v742 = vsub.f32 %v620, %v708
      %v743 = vsub.f32 %v623, %v712
      %v744 = vsub.f32 %v626, %v716
      %v745 = vsub.f32 %v629, %v720
      %v746 = vsub.f32 %v632, %v724
      %v747 = vsub.f32 %v635, %v728
      %v748 = vsub.f32 %v638, %v732
      %v749 = vmul.f32 %v741, 1.442695
      %v750 = vpow.pop %v749
      %v751 = vmul.f32 %v742, 1.442695
      %v752 = vpow.pop %v751
      %v753 = vmul.f32 %v743, 1.442695
      %v754 = vpow.pop %v753
      %v755 = vmul.f32 %v744, 1.442695
      %v756 = vpow.pop %v755
      %v757 = vmul.f32 %v745, 1.442695
      %v758 = vpow.pop %v757
      %v759 = vmul.f32 %v746, 1.442695
      %v760 = vpow.pop %v759
      %v761 = vmul.f32 %v747, 1.442695
      %v762 = vpow.pop %v761
      %v763 = vmul.f32 %v748, 1.442695
      %v764 = vpow.pop %v763
      %773 = vset.pattern.permute.xlu0 0
      %774 = vperm.xlu0 %773, %v750
      %v775 = vpop.permute.xlu0 %774
      %776 = vset.pattern.permute.xlu0 0
      %777 = vperm.xlu0 %776, %v752
      %v778 = vpop.permute.xlu0 %777
      %779 = vset.pattern.permute.xlu0 0
      %780 = vperm.xlu0 %779, %v754
      %v781 = vpop.permute.xlu0 %780
      %782 = vset.pattern.permute.xlu0 0
      %783 = vperm.xlu0 %782, %v756
      %v784 = vpop.permute.xlu0 %783
      %785 = vset.pattern.permute.xlu0 0
      %786 = vperm.xlu0 %785, %v758
      %v787 = vpop.permute.xlu0 %786
      %788 = vset.pattern.permute.xlu0 0
      %789 = vperm.xlu0 %788, %v760
      %v790 = vpop.permute.xlu0 %789
      %791 = vset.pattern.permute.xlu0 0
      %792 = vperm.xlu0 %791, %v762
      %v793 = vpop.permute.xlu0 %792
      %794 = vset.pattern.permute.xlu0 0
      %795 = vperm.xlu0 %794, %v764
      %v796 = vpop.permute.xlu0 %795
      %v797 = vlaneseq
      %v798 = vshrl.u32 %v797, 7
      %v799 = vsub.s32 %v648, %v798
      %v800 = vrot.slane %v775, %v799
      %v801 = vlaneseq
      %v802 = vshrl.u32 %v801, 7
      %v803 = vsub.s32 %v648, %v802
      %v804 = vrot.slane %v778, %v803
      %v805 = vlaneseq
      %v806 = vshrl.u32 %v805, 7
      %v807 = vsub.s32 %v648, %v806
      %v808 = vrot.slane %v781, %v807
      %v809 = vlaneseq
      %v810 = vshrl.u32 %v809, 7
      %v811 = vsub.s32 %v648, %v810
      %v812 = vrot.slane %v784, %v811
      %v813 = vlaneseq
      %v814 = vshrl.u32 %v813, 7
      %v815 = vsub.s32 %v648, %v814
      %v816 = vrot.slane %v787, %v815
      %v817 = vlaneseq
      %v818 = vshrl.u32 %v817, 7
      %v819 = vsub.s32 %v648, %v818
      %v820 = vrot.slane %v790, %v819
      %v821 = vlaneseq
      %v822 = vshrl.u32 %v821, 7
      %v823 = vsub.s32 %v648, %v822
      %v824 = vrot.slane %v793, %v823
      %v825 = vlaneseq
      %v826 = vshrl.u32 %v825, 7
      %v827 = vsub.s32 %v648, %v826
      %v828 = vrot.slane %v796, %v827
      %v829 = vsel %vm681, %v804, %v800
      %v830 = vsel %vm683, %v808, %v829
      %v831 = vsel %vm685, %v812, %v830
      %v832 = vsel %vm687, %v816, %v831
      %v833 = vsel %vm689, %v820, %v832
      %v834 = vsel %vm691, %v824, %v833
      %v835 = vsel %vm693, %v828, %v834
      %v837 = vsel %vm696, %v835, 0.0
      %838 = vadd.xlane.f32.xlu0 %v837
      %v839 = vpop.xlane.xlu0 %838
      %v840 = vrcp.pop %v839
      %v842 = vlaneseq
      %v843 = vshrl.u32 %v842, 7
      %v844 = vsub.s32 0, %v843
      %v845 = vrot.slane %v840, %v844
      %v846 = vlaneseq
      %v847 = vshrl.u32 %v846, 7
      %v848 = vsub.s32 1, %v847
      %v849 = vrot.slane %v840, %v848
      %v850 = vlaneseq
      %v851 = vshrl.u32 %v850, 7
      %v852 = vsub.s32 2, %v851
      %v853 = vrot.slane %v840, %v852
      %v854 = vlaneseq
      %v855 = vshrl.u32 %v854, 7
      %v856 = vsub.s32 3, %v855
      %v857 = vrot.slane %v840, %v856
      %v858 = vlaneseq
      %v859 = vshrl.u32 %v858, 7
      %v860 = vsub.s32 4, %v859
      %v861 = vrot.slane %v840, %v860
      %v862 = vlaneseq
      %v863 = vshrl.u32 %v862, 7
      %v864 = vsub.s32 5, %v863
      %v865 = vrot.slane %v840, %v864
      %v866 = vlaneseq
      %v867 = vshrl.u32 %v866, 7
      %v868 = vsub.s32 6, %v867
      %v869 = vrot.slane %v840, %v868
      %v870 = vlaneseq
      %v871 = vshrl.u32 %v870, 7
      %v872 = vsub.s32 7, %v871
      %v873 = vrot.slane %v840, %v872
      %v882 = vmul.f32 %v750, %v845
      %v883 = vmul.f32 %v752, %v849
      %v884 = vmul.f32 %v754, %v853
      %v885 = vmul.f32 %v756, %v857
      %v886 = vmul.f32 %v758, %v861
      %v887 = vmul.f32 %v760, %v865
      %v888 = vmul.f32 %v762, %v869
      %v889 = vmul.f32 %v764, %v873
      %898 = vset.pattern.permute.xlu0 0
      %899 = vperm.xlu0 %898, %v882
      %v900 = vpop.permute.xlu0 %899
      %901 = vset.pattern.permute.xlu0 0
      %902 = vperm.xlu0 %901, %v883
      %v903 = vpop.permute.xlu0 %902
      %904 = vset.pattern.permute.xlu0 0
      %905 = vperm.xlu0 %904, %v884
      %v906 = vpop.permute.xlu0 %905
      %907 = vset.pattern.permute.xlu0 0
      %908 = vperm.xlu0 %907, %v885
      %v909 = vpop.permute.xlu0 %908
      %910 = vset.pattern.permute.xlu0 0
      %911 = vperm.xlu0 %910, %v886
      %v912 = vpop.permute.xlu0 %911
      %913 = vset.pattern.permute.xlu0 0
      %914 = vperm.xlu0 %913, %v887
      %v915 = vpop.permute.xlu0 %914
      %916 = vset.pattern.permute.xlu0 0
      %917 = vperm.xlu0 %916, %v888
      %v918 = vpop.permute.xlu0 %917
      %919 = vset.pattern.permute.xlu0 0
      %920 = vperm.xlu0 %919, %v889
      %v921 = vpop.permute.xlu0 %920
      %v922 = vlaneseq
      %v923 = vshrl.u32 %v922, 7
      %v924 = vsub.s32 %v648, %v923
      %v925 = vrot.slane %v900, %v924
      %v926 = vlaneseq
      %v927 = vshrl.u32 %v926, 7
      %v928 = vsub.s32 %v648, %v927
      %v929 = vrot.slane %v903, %v928
      %v930 = vlaneseq
      %v931 = vshrl.u32 %v930, 7
      %v932 = vsub.s32 %v648, %v931
      %v933 = vrot.slane %v906, %v932
      %v934 = vlaneseq
      %v935 = vshrl.u32 %v934, 7
      %v936 = vsub.s32 %v648, %v935
      %v937 = vrot.slane %v909, %v936
      %v938 = vlaneseq
      %v939 = vshrl.u32 %v938, 7
      %v940 = vsub.s32 %v648, %v939
      %v941 = vrot.slane %v912, %v940
      %v942 = vlaneseq
      %v943 = vshrl.u32 %v942, 7
      %v944 = vsub.s32 %v648, %v943
      %v945 = vrot.slane %v915, %v944
      %v946 = vlaneseq
      %v947 = vshrl.u32 %v946, 7
      %v948 = vsub.s32 %v648, %v947
      %v949 = vrot.slane %v918, %v948
      %v950 = vlaneseq
      %v951 = vshrl.u32 %v950, 7
      %v952 = vsub.s32 %v648, %v951
      %v953 = vrot.slane %v921, %v952
      %v954 = vsel %vm681, %v929, %v925
      %v955 = vsel %vm683, %v933, %v954
      %v956 = vsel %vm685, %v937, %v955
      %v957 = vsel %vm687, %v941, %v956
      %v958 = vsel %vm689, %v945, %v957
      %v959 = vsel %vm691, %v949, %v958
      %v960 = vsel %vm693, %v953, %v959
      %962 = vst.msk [vmem:[%s268] sm:$0xff] %vm696, %v960
      %p963 = scmp.lt.s32.totalorder %s17, 1
      %s964 = scalar_select %p963, %s17, 1
      %s965 = smul.addr %s964, 8
      %s966 = scalar_lea.vmem %s6, %s965
      // Predicated region
      $region45: #{tpu_custom_call.1} parent=43 // pred_check
        %p967 = pneg %p171
      $region46: #{tpu_custom_call.1} parent=43 // pred_check_branch
        %969 = sbr.rel (%p967) target = $region48
      $region47: #{tpu_custom_call.1} parent=43 // pred_region
        _
      $region48: #{tpu_custom_call.1} parent=43 // pred_fallthru
        _
    $region44: #{tpu_custom_call.1} parent=5 // pred_fallthru
      _
    %p970 = scmp.le.s32.totalorder 2, %s12
    // Predicated region
    $region49: #{tpu_custom_call.1} parent=5 // pred_check
      %p971 = pneg %p970
    $region50: #{tpu_custom_call.1} parent=5 // pred_check_branch
      %973 = sbr.rel (%p971) target = $region52
    $region51: #{tpu_custom_call.1} parent=5 // pred_region
      %s974 = ssub.s32 %s12, 2
      // Predicated region
      $region53: #{tpu_custom_call.1} parent=51 // pred_check
        %p975 = pneg %p177
      $region54: #{tpu_custom_call.1} parent=51 // pred_check_branch
        %977 = sbr.rel (%p975) target = $region56
      $region55: #{tpu_custom_call.1} parent=51 // pred_region
        %p978 = scmp.lt.s32.totalorder %s18, 1
        %s979 = scalar_select %p978, %s18, 1
        %s980 = smul.addr %s979, 8
        %s981 = scalar_lea.vmem %s6, %s980
      $region56: #{tpu_custom_call.1} parent=51 // pred_fallthru
        _
    $region52: #{tpu_custom_call.1} parent=5 // pred_fallthru
      _
  $region6: #{tpu_custom_call.1} parent=0 // loop_footer
    %s16 = sadd.s32 1, %s12
  $region7: #{tpu_custom_call.1} parent=0 // loop_footer_branch
    %11 = sbr.rel target = $region3
  $region8: #{tpu_custom_call.1} parent=0 // loop_exit
    _

</llo_original>
